<compile_context>
chip_gen: v7x
topology: tpu7x:2x2x1
jax: 0.10.0
libtpu: 0.0.40
codegen_flags: <defaults>
</compile_context>

<pallas_src>
import functools

import jax
import jax.numpy as jnp
from jax import lax
from jax.experimental import pallas as pl
from jax.experimental.pallas import tpu as pltpu


def _round_up(x, n):
    return ((x + n - 1) // n) * n


def _pick_tm(batch):
    # Batch tile: multiple of 16 (bf16 sublane tile).  Large tiles amortize
    # weight re-streaming; when the batch is big enough, split into >=2 tiles
    # so the "parallel" batch axis feeds both v7x TensorCores.
    bp = _round_up(batch, 16)
    if bp <= 256:
        return bp
    if bp >= 1024:
        return 512
    return _round_up((bp + 1) // 2, 16)


_VMEM_LIMIT = 32 * 1024 * 1024  # explicit limit; tiles use only a few MiB


# ----------------------------- kernels ------------------------------------


def _backbone_kernel(x_ref, w_ref, b_ref, feat_ref, featn_ref):
    # x: [TM, TK] f32, w: [TK, Ep] bf16, b: [1, Ep] f32
    # feat (raw, f32) and featn (L2-normalized, bf16) are resident across k.
    k = pl.program_id(1)

    @pl.when(k == 0)
    def _():
        feat_ref[...] = jnp.zeros_like(feat_ref)

    # bf16 MXU operands, f32 accumulation directly into the output block.
    feat_ref[...] += jnp.dot(
        x_ref[...].astype(jnp.bfloat16),
        w_ref[...],
        preferred_element_type=jnp.float32,
    )

    @pl.when(k == pl.num_programs(1) - 1)
    def _():
        f = feat_ref[...] + b_ref[...]          # bias once, at the last K step
        feat_ref[...] = f
        # L2-normalize here (once per row) so CosFace never recomputes it.
        # eps2 = (1e-12)**2 matches F.normalize's eps on the norm.
        inv = lax.rsqrt(
            jnp.maximum(jnp.sum(f * f, axis=-1, keepdims=True), 1e-24)
        )
        featn_ref[...] = (f * inv).astype(featn_ref.dtype)


def _cosface_kernel(featn_ref, wn_ref, labels_ref, out_ref, *, s, m, tn):
    # featn: [TM, Ep] bf16 (unit rows), wn: [Ep, TN] bf16 (unit columns),
    # labels: [TM, 1] int32  ->  out: [TM, TN] f32
    j = pl.program_id(1)

    cosine = jnp.dot(
        featn_ref[...], wn_ref[...], preferred_element_type=jnp.float32
    )                                                            # [TM, TN]

    # one-hot from the GLOBAL class index (tile offset j * tn).
    col = lax.broadcasted_iota(jnp.int32, cosine.shape, 1) + j * tn
    one_hot = (col == labels_ref[...]).astype(jnp.float32)

    # s * (one_hot * (cosine - m) + (1 - one_hot) * cosine)
    out_ref[...] = s * cosine - (s * m) * one_hot


# ----------------------------- wrappers ------------------------------------


def backbone_forward(x_flat, w_bf16, b, *, tm, tk):
    Bp, Kp = x_flat.shape
    Ep = w_bf16.shape[1]
    grid = (Bp // tm, Kp // tk)
    return pl.pallas_call(
        _backbone_kernel,
        out_shape=(
            jax.ShapeDtypeStruct((Bp, Ep), jnp.float32),    # raw features
            jax.ShapeDtypeStruct((Bp, Ep), jnp.bfloat16),   # L2-normalized features
        ),
        grid_spec=pltpu.PrefetchScalarGridSpec(
            num_scalar_prefetch=0,
            grid=grid,
            in_specs=[
                pl.BlockSpec((tm, tk), lambda i, k: (i, k)),
                pl.BlockSpec((tk, Ep), lambda i, k: (k, 0)),
                pl.BlockSpec((1, Ep), lambda i, k: (0, 0)),
            ],
            out_specs=[
                pl.BlockSpec((tm, Ep), lambda i, k: (i, 0)),
                pl.BlockSpec((tm, Ep), lambda i, k: (i, 0)),
            ],
        ),
        compiler_params=pltpu.CompilerParams(
            dimension_semantics=("parallel", "arbitrary"),
            vmem_limit_bytes=_VMEM_LIMIT,
        ),
    )(x_flat, w_bf16, b)


def cosface_forward(featn, wn_t, labels2d, *, s, m, tm, tn):
    Bp, Ep = featn.shape
    Cp = wn_t.shape[1]
    grid = (Bp // tm, Cp // tn)
    return pl.pallas_call(
        functools.partial(_cosface_kernel, s=float(s), m=float(m), tn=tn),
        out_shape=jax.ShapeDtypeStruct((Bp, Cp), jnp.float32),
        grid_spec=pltpu.PrefetchScalarGridSpec(
            num_scalar_prefetch=0,
            grid=grid,
            in_specs=[
                pl.BlockSpec((tm, Ep), lambda i, j: (i, 0)),
                pl.BlockSpec((Ep, tn), lambda i, j: (0, j)),
                pl.BlockSpec((tm, 1), lambda i, j: (i, 0)),
            ],
            out_specs=pl.BlockSpec((tm, tn), lambda i, j: (i, j)),
        ),
        compiler_params=pltpu.CompilerParams(
            dimension_semantics=("parallel", "parallel"),
            vmem_limit_bytes=_VMEM_LIMIT,
        ),
    )(featn, wn_t, labels2d)


def model_forward(inputs, labels, params, *, s=64.0, m=0.35):
    # inputs: NCHW [B, C, H, W]
    B = inputs.shape[0]
    x = inputs.reshape(B, -1).astype(jnp.float32)
    D_in = x.shape[1]

    bw = params["backbone_w"].astype(jnp.float32)   # [D_in, E]
    bb = params["backbone_b"].astype(jnp.float32)   # [1, E]
    hw = params["head_w"].astype(jnp.float32)       # [C, E]
    E = bw.shape[1]
    C = hw.shape[0]

    # ---- tile plan (shapes are static under jit) ---------------------------
    tm = _pick_tm(B)                                   # batch tile (mult. of 16)
    tn = 256 if C >= 256 else _round_up(C, 128)        # class tile (lane-dense)
    tk = 512 if D_in >= 512 else _round_up(D_in, 128)  # D_in reduction tile
    Bp = _round_up(B, tm)
    Cp = _round_up(C, tn)
    Kp = _round_up(D_in, tk)
    Ep = _round_up(E, 128)

    # ---- pre-normalize head weights ONCE (f32), transpose, cast bf16 -------
    inv_wn = lax.rsqrt(jnp.maximum(jnp.sum(hw * hw, axis=1, keepdims=True), 1e-24))
    hw_n = hw * inv_wn                                                 # [C, E]
    hw_nt = jnp.pad(hw_n, ((0, Cp - C), (0, Ep - E))).T.astype(jnp.bfloat16)  # [Ep, Cp]

    # ---- zero-pad to tile multiples (padding contributes 0 to dots/norms) --
    x_p = jnp.pad(x, ((0, Bp - B), (0, Kp - D_in)))
    bw_p = jnp.pad(bw, ((0, Kp - D_in), (0, Ep - E))).astype(jnp.bfloat16)
    bb_p = jnp.pad(bb.reshape(1, E), ((0, 0), (0, Ep - E)))
    lbl_p = jnp.pad(labels.astype(jnp.int32), (0, Bp - B)).reshape(Bp, 1)

    feat_p, featn_p = backbone_forward(x_p, bw_p, bb_p, tm=tm, tk=tk)
    logits_p = cosface_forward(featn_p, hw_nt, lbl_p, s=s, m=m, tm=tm, tn=tn)

    return feat_p[:B, :E], logits_p[:B, :C]


# ------------------------------- main ---------------------------------------

if __name__ == "__main__":
    # Small shapes consistent with the module:
    B, C, H, W = 2, 4, 16, 16          # image batch (NCHW)
    embedding_size = 32                 # args.embedding_size
    num_class = 8                       # num_class
    S_SCALE, M_MARGIN = 64.0, 0.35      # CosFace hyperparameters (static)

    key = jax.random.PRNGKey(0)
    k_x, k_bw, k_bb, k_hw, k_lbl = jax.random.split(key, 5)

    inputs = jax.random.normal(k_x, (B, C, H, W), dtype=jnp.float32)
    labels = jax.random.randint(k_lbl, (B,), 0, num_class, dtype=jnp.int32)

    D_in = C * H * W
    params = {
        "backbone_w": 0.02 * jax.random.normal(k_bw, (D_in, embedding_size), jnp.float32),
        "backbone_b": 0.01 * jax.random.normal(k_bb, (1, embedding_size), jnp.float32),
        "head_w": jax.random.normal(k_hw, (num_class, embedding_size), jnp.float32),
    }

    fwd = jax.jit(functools.partial(model_forward, s=S_SCALE, m=M_MARGIN))
    features, outputs = fwd(inputs, labels, params)
    jax.block_until_ready((features, outputs))

    assert features.shape == (B, embedding_size)
    assert outputs.shape == (B, num_class)

    # Pure-JAX f32 reference check.  Tolerances account for bf16 MXU operands
    # (f32 accumulation) and s=64 amplification on the logits.
    x_flat = inputs.reshape(B, -1)
    feat_ref = x_flat @ params["backbone_w"] + params["backbone_b"]
    f_n = feat_ref / jnp.maximum(
        jnp.linalg.norm(feat_ref, axis=1, keepdims=True), 1e-12)
    w_n = params["head_w"] / jnp.maximum(
        jnp.linalg.norm(params["head_w"], axis=1, keepdims=True), 1e-12)
    cos_ref = f_n @ w_n.T
    one_hot = jax.nn.one_hot(labels, num_class, dtype=jnp.float32)
    out_ref = S_SCALE * (cos_ref - M_MARGIN * one_hot)
    assert jnp.allclose(features, feat_ref, rtol=1e-2, atol=2e-2)
    assert jnp.allclose(outputs, out_ref, rtol=2e-2, atol=5e-1)

    print("KERNEL_OK")
</pallas_src>

<mosaic_0001>
module attributes {stable_mosaic.version = 11 : i64} {
  func.func @_backbone_kernel(%arg0: i32, %arg1: i32, %arg2: memref<16x512xf32, #tpu.memory_space<vmem>>, %arg3: memref<512x128xbf16, #tpu.memory_space<vmem>>, %arg4: memref<1x128xf32, #tpu.memory_space<vmem>>, %arg5: memref<16x128xf32, #tpu.memory_space<vmem>>, %arg6: memref<16x128xbf16, #tpu.memory_space<vmem>>) attributes {dimension_semantics = [#tpu.dimension_semantics<parallel>, #tpu.dimension_semantics<arbitrary>], iteration_bounds = array<i64: 1, 2>, scalar_prefetch = 0 : i64, scratch_operands = 0 : i64, tpu.core_type = #tpu.core_type<tc>, window_params = [{transform_indices = @transform_0, window_bounds = array<i64: 16, 512>}, {transform_indices = @transform_1, window_bounds = array<i64: 512, 128>}, {pipeline_mode = #tpu.pipeline_mode<synchronous>, transform_indices = @transform_2, window_bounds = array<i64: 1, 128>}, {transform_indices = @transform_3, window_bounds = array<i64: 16, 128>}, {transform_indices = @transform_4, window_bounds = array<i64: 16, 128>}]} {
    %c0_i32 = arith.constant 0 : i32
    %0 = arith.cmpi eq, %arg1, %c0_i32 : i32
    %1 = arith.extui %0 : i1 to i32
    %c0_i32_0 = arith.constant 0 : i32
    %2 = arith.cmpi ne, %1, %c0_i32_0 : i32
    scf.if %2 {
      %cst_9 = arith.constant 0.000000e+00 : f32
      %13 = vector.broadcast %cst_9 : f32 to vector<16x128xf32>
      %c0_10 = arith.constant 0 : index
      %c0_11 = arith.constant 0 : index
      %14 = vector.load %arg5[%c0_10, %c0_11] : memref<16x128xf32, #tpu.memory_space<vmem>>, vector<16x128xf32>
      tpu.vector_store %arg5[%c0_10, %c0_11], %13 {strides = array<i32>} : memref<16x128xf32, #tpu.memory_space<vmem>>, vector<16x128xf32>,
    } else {
    }
    %c0 = arith.constant 0 : index
    %c0_1 = arith.constant 0 : index
    %3 = vector.load %arg5[%c0, %c0_1] : memref<16x128xf32, #tpu.memory_space<vmem>>, vector<16x128xf32>
    %c0_2 = arith.constant 0 : index
    %c0_3 = arith.constant 0 : index
    %4 = vector.load %arg2[%c0_2, %c0_3] : memref<16x512xf32, #tpu.memory_space<vmem>>, vector<16x512xf32>
    %5 = arith.truncf %4 : vector<16x512xf32> to vector<16x512xbf16>
    %c0_4 = arith.constant 0 : index
    %c0_5 = arith.constant 0 : index
    %6 = vector.load %arg3[%c0_4, %c0_5] : memref<512x128xbf16, #tpu.memory_space<vmem>>, vector<512x128xbf16>
    %cst = arith.constant dense<0.000000e+00> : vector<16x128xf32>
    %7 = tpu.matmul %5, %6, %cst {dimension_numbers = #tpu.dot_dimension_numbers<[1], [0], [0], [1], [0, 0, 1, 1], [], []>} : vector<16x512xbf16>, vector<512x128xbf16>, vector<16x128xf32> -> vector<16x128xf32>
    %8 = arith.addf %3, %7 : vector<16x128xf32>
    %c0_6 = arith.constant 0 : index
    %c0_7 = arith.constant 0 : index
    %9 = vector.load %arg5[%c0_6, %c0_7] : memref<16x128xf32, #tpu.memory_space<vmem>>, vector<16x128xf32>
    tpu.vector_store %arg5[%c0_6, %c0_7], %8 {strides = array<i32>} : memref<16x128xf32, #tpu.memory_space<vmem>>, vector<16x128xf32>,
    %c1_i32 = arith.constant 1 : i32
    %10 = arith.cmpi eq, %arg1, %c1_i32 : i32
    %11 = arith.extui %10 : i1 to i32
    %c0_i32_8 = arith.constant 0 : i32
    %12 = arith.cmpi ne, %11, %c0_i32_8 : i32
    scf.if %12 {
      %c0_9 = arith.constant 0 : index
      %c0_10 = arith.constant 0 : index
      %13 = vector.load %arg5[%c0_9, %c0_10] : memref<16x128xf32, #tpu.memory_space<vmem>>, vector<16x128xf32>
      %c0_11 = arith.constant 0 : index
      %c0_12 = arith.constant 0 : index
      %14 = vector.load %arg4[%c0_11, %c0_12] : memref<1x128xf32, #tpu.memory_space<vmem>>, vector<1x128xf32>
      %15 = vector.broadcast %14 : vector<1x128xf32> to vector<16x128xf32>
      %16 = arith.addf %13, %15 : vector<16x128xf32>
      %c0_13 = arith.constant 0 : index
      %c0_14 = arith.constant 0 : index
      %17 = vector.load %arg5[%c0_13, %c0_14] : memref<16x128xf32, #tpu.memory_space<vmem>>, vector<16x128xf32>
      tpu.vector_store %arg5[%c0_13, %c0_14], %16 {strides = array<i32>} : memref<16x128xf32, #tpu.memory_space<vmem>>, vector<16x128xf32>,
      %18 = arith.mulf %16, %16 : vector<16x128xf32>
      %cst_15 = arith.constant dense<0.000000e+00> : vector<16xf32>
      %19 = vector.multi_reduction <add>, %18, %cst_15 [1] : vector<16x128xf32> to vector<16xf32>
      %20 = vector.shape_cast %19 : vector<16xf32> to vector<16x1xf32>
      %cst_16 = arith.constant 1.000000e-24 : f32
      %21 = vector.broadcast %cst_16 : f32 to vector<16x1xf32>
      %22 = arith.maximumf %20, %21 : vector<16x1xf32>
      %23 = math.rsqrt %22 : vector<16x1xf32>
      %24 = vector.broadcast %23 : vector<16x1xf32> to vector<16x128xf32>
      %25 = arith.mulf %16, %24 : vector<16x128xf32>
      %26 = arith.truncf %25 : vector<16x128xf32> to vector<16x128xbf16>
      %c0_17 = arith.constant 0 : index
      %c0_18 = arith.constant 0 : index
      %27 = vector.load %arg6[%c0_17, %c0_18] : memref<16x128xbf16, #tpu.memory_space<vmem>>, vector<16x128xbf16>
      tpu.vector_store %arg6[%c0_17, %c0_18], %26 {strides = array<i32>} : memref<16x128xbf16, #tpu.memory_space<vmem>>, vector<16x128xbf16>,
    } else {
    }
    return
  }
  func.func @transform_0(%arg0: i32, %arg1: i32) -> (i32, i32) {
    %c0_i32 = arith.constant 0 : i32
    return %arg0, %arg1 : i32, i32
  }
  func.func @transform_1(%arg0: i32, %arg1: i32) -> (i32, i32) {
    %c0_i32 = arith.constant 0 : i32
    %c0_i32_0 = arith.constant 0 : i32
    return %arg1, %c0_i32 : i32, i32
  }
  func.func @transform_2(%arg0: i32, %arg1: i32) -> (i32, i32) {
    %c0_i32 = arith.constant 0 : i32
    %c0_i32_0 = arith.constant 0 : i32
    %c0_i32_1 = arith.constant 0 : i32
    return %c0_i32, %c0_i32_0 : i32, i32
  }
  func.func @transform_3(%arg0: i32, %arg1: i32) -> (i32, i32) {
    %c0_i32 = arith.constant 0 : i32
    %c0_i32_0 = arith.constant 0 : i32
    return %arg0, %c0_i32 : i32, i32
  }
  func.func @transform_4(%arg0: i32, %arg1: i32) -> (i32, i32) {
    %c0_i32 = arith.constant 0 : i32
    %c0_i32_0 = arith.constant 0 : i32
    return %arg0, %c0_i32 : i32, i32
  }
}

module attributes {stable_mosaic.version = 11 : i64} {
  func.func @_cosface_kernel(%arg0: i32, %arg1: i32, %arg2: memref<16x128xbf16, #tpu.memory_space<vmem>>, %arg3: memref<128x128xbf16, #tpu.memory_space<vmem>>, %arg4: memref<16x1xi32, #tpu.memory_space<vmem>>, %arg5: memref<16x128xf32, #tpu.memory_space<vmem>>) attributes {dimension_semantics = [#tpu.dimension_semantics<parallel>, #tpu.dimension_semantics<parallel>], iteration_bounds = array<i64: 1, 1>, scalar_prefetch = 0 : i64, scratch_operands = 0 : i64, tpu.core_type = #tpu.core_type<tc>, window_params = [{transform_indices = @transform_0, window_bounds = array<i64: 16, 128>}, {transform_indices = @transform_1, window_bounds = array<i64: 128, 128>}, {transform_indices = @transform_2, window_bounds = array<i64: 16, 1>}, {transform_indices = @transform_3, window_bounds = array<i64: 16, 128>}]} {
    %c0 = arith.constant 0 : index
    %c0_0 = arith.constant 0 : index
    %0 = vector.load %arg2[%c0, %c0_0] : memref<16x128xbf16, #tpu.memory_space<vmem>>, vector<16x128xbf16>
    %c0_1 = arith.constant 0 : index
    %c0_2 = arith.constant 0 : index
    %1 = vector.load %arg3[%c0_1, %c0_2] : memref<128x128xbf16, #tpu.memory_space<vmem>>, vector<128x128xbf16>
    %cst = arith.constant dense<0.000000e+00> : vector<16x128xf32>
    %2 = tpu.matmul %0, %1, %cst {dimension_numbers = #tpu.dot_dimension_numbers<[1], [0], [0], [1], [0, 0, 1, 1], [], []>} : vector<16x128xbf16>, vector<128x128xbf16>, vector<16x128xf32> -> vector<16x128xf32>
    %3 = tpu.iota {dimensions = array<i32: 1>} : vector<16x128xi32>
    %c128_i32 = arith.constant 128 : i32
    %4 = arith.muli %arg1, %c128_i32 : i32
    %5 = vector.broadcast %4 : i32 to vector<16x128xi32>
    %6 = arith.addi %3, %5 : vector<16x128xi32>
    %c0_3 = arith.constant 0 : index
    %c0_4 = arith.constant 0 : index
    %7 = vector.load %arg4[%c0_3, %c0_4] : memref<16x1xi32, #tpu.memory_space<vmem>>, vector<16x1xi32>
    %8 = vector.broadcast %7 : vector<16x1xi32> to vector<16x128xi32>
    %9 = arith.cmpi eq, %6, %8 : vector<16x128xi32>
    %10 = arith.extui %9 : vector<16x128xi1> to vector<16x128xi32>
    %11 = arith.sitofp %10 : vector<16x128xi32> to vector<16x128xf32>
    %cst_5 = arith.constant 6.400000e+01 : f32
    %12 = vector.broadcast %cst_5 : f32 to vector<16x128xf32>
    %13 = arith.mulf %12, %2 : vector<16x128xf32>
    %cst_6 = arith.constant 2.240000e+01 : f32
    %14 = vector.broadcast %cst_6 : f32 to vector<16x128xf32>
    %15 = arith.mulf %14, %11 : vector<16x128xf32>
    %16 = arith.subf %13, %15 : vector<16x128xf32>
    %c0_7 = arith.constant 0 : index
    %c0_8 = arith.constant 0 : index
    %17 = vector.load %arg5[%c0_7, %c0_8] : memref<16x128xf32, #tpu.memory_space<vmem>>, vector<16x128xf32>
    tpu.vector_store %arg5[%c0_7, %c0_8], %16 {strides = array<i32>} : memref<16x128xf32, #tpu.memory_space<vmem>>, vector<16x128xf32>,
    return
  }
  func.func @transform_0(%arg0: i32, %arg1: i32) -> (i32, i32) {
    %c0_i32 = arith.constant 0 : i32
    %c0_i32_0 = arith.constant 0 : i32
    return %arg0, %c0_i32 : i32, i32
  }
  func.func @transform_1(%arg0: i32, %arg1: i32) -> (i32, i32) {
    %c0_i32 = arith.constant 0 : i32
    %c0_i32_0 = arith.constant 0 : i32
    return %c0_i32, %arg1 : i32, i32
  }
  func.func @transform_2(%arg0: i32, %arg1: i32) -> (i32, i32) {
    %c0_i32 = arith.constant 0 : i32
    %c0_i32_0 = arith.constant 0 : i32
    return %arg0, %c0_i32 : i32, i32
  }
  func.func @transform_3(%arg0: i32, %arg1: i32) -> (i32, i32) {
    %c0_i32 = arith.constant 0 : i32
    return %arg0, %arg1 : i32, i32
  }
}

</mosaic_0001>

<llo_original>
// kernel: model_forward.3
$region0: #{model_forward.3}
  #allocation0 [shape = 'u32[]', space=smem, size = 0x4, offset = 0x4, fixed_abs, tag = 'smem constant byte address 0x4 - core index']
  #allocation1 [shape = 'u32[144,128]{1,0:T(1,128)}', space=vmem, size = 0x12000, scoped, tag = 'internal scratch']
  %s0 = inlined_call_operand.vmem [shape: bf16[16,128], index: 0, kind: input, shape index: {}]
  %s1 = inlined_call_operand.vmem [shape: bf16[128,128], index: 1, kind: input, shape index: {}]
  %s2 = inlined_call_operand.vmem [shape: s32[16,1], index: 2, kind: input, shape index: {}]
  %s3 = inlined_call_operand.vmem [shape: f32[16,128], index: 3, kind: output, shape index: {}]
  %s4 = sld [smem:[#allocation0]]
  $region22: #{model_forward.3} parent=0
    _
  %s6 = ssub.s32 1, %s4
  %s7 = scalar_select 0, %s6, %s4
  // Predicated region
  $region2: #{model_forward.3} parent=0 // pred_check
    _
  $region3: #{model_forward.3} parent=0 // pred_check_branch
    %9 = sbr.rel (0) target = $region5
  $region4: #{model_forward.3} parent=0 // pred_region
    _
  $region5: #{model_forward.3} parent=0 // pred_fallthru
    _
  // Predicated region
  $region6: #{model_forward.3} parent=0 // pred_check
    _
  $region7: #{model_forward.3} parent=0 // pred_check_branch
    %11 = sbr.rel (0) target = $region9
  $region8: #{model_forward.3} parent=0 // pred_region
    _
  $region9: #{model_forward.3} parent=0 // pred_fallthru
    _
  // Predicated region
  $region10: #{model_forward.3} parent=0 // pred_check
    _
  $region11: #{model_forward.3} parent=0 // pred_check_branch
    %13 = sbr.rel (0) target = $region13
  $region12: #{model_forward.3} parent=0 // pred_region
    _
  $region13: #{model_forward.3} parent=0 // pred_fallthru
    _
  %v15 = vld [vmem:[%s0] sm:$0xf]
  %v16 = vld [vmem:[%s0 + $0x4] sm:$0xf]
  %v17 = vld [vmem:[%s1] sm:$0xf]
  %v18 = vld [vmem:[%s1 + $0x4] sm:$0xf]
  %v19 = vld [vmem:[%s1 + $0x8] sm:$0xf]
  %v20 = vld [vmem:[%s1 + $0xc] sm:$0xf]
  %v21 = vld [vmem:[%s1 + $0x10] sm:$0xf]
  %v22 = vld [vmem:[%s1 + $0x14] sm:$0xf]
  %v23 = vld [vmem:[%s1 + $0x18] sm:$0xf]
  %v24 = vld [vmem:[%s1 + $0x1c] sm:$0xf]
  %v25 = vld [vmem:[%s1 + $0x20] sm:$0xf]
  %v26 = vld [vmem:[%s1 + $0x24] sm:$0xf]
  %v27 = vld [vmem:[%s1 + $0x28] sm:$0xf]
  %v28 = vld [vmem:[%s1 + $0x2c] sm:$0xf]
  %v29 = vld [vmem:[%s1 + $0x30] sm:$0xf]
  %v30 = vld [vmem:[%s1 + $0x34] sm:$0xf]
  %v31 = vld [vmem:[%s1 + $0x38] sm:$0xf]
  %v32 = vld [vmem:[%s1 + $0x3c] sm:$0xf]
  %v35 = vunpack.c.l.b16 %v15
  %v36 = vunpack.c.l.b16 %v16
  %v37 = vpack.c.b16 %v36, %v35
  %v55 = vunpack.c.l.b16 %v17
  %v56 = vunpack.c.l.b16 %v18
  %v57 = vunpack.c.l.b16 %v19
  %v58 = vunpack.c.l.b16 %v20
  %v59 = vunpack.c.l.b16 %v21
  %v60 = vunpack.c.l.b16 %v22
  %v61 = vunpack.c.l.b16 %v23
  %v62 = vunpack.c.l.b16 %v24
  %v63 = vunpack.c.l.b16 %v25
  %v64 = vunpack.c.l.b16 %v26
  %v65 = vunpack.c.l.b16 %v27
  %v66 = vunpack.c.l.b16 %v28
  %v67 = vunpack.c.l.b16 %v29
  %v68 = vunpack.c.l.b16 %v30
  %v69 = vunpack.c.l.b16 %v31
  %v70 = vunpack.c.l.b16 %v32
  %v71 = vpack.c.b16 %v56, %v55
  %v72 = vpack.c.b16 %v58, %v57
  %v73 = vpack.c.b16 %v60, %v59
  %v74 = vpack.c.b16 %v62, %v61
  %v75 = vpack.c.b16 %v64, %v63
  %v76 = vpack.c.b16 %v66, %v65
  %v77 = vpack.c.b16 %v68, %v67
  %v78 = vpack.c.b16 %v70, %v69
  %87 = vmatprep.subr.bf16.mxu0 0
  %88 = vmatpush1.bf16.msra.mxu0 %v71
  %89 = vmatprep.subr.bf16.mxu0 0
  %90 = vmatpush1.bf16.msra.mxu0 %v72
  %91 = vmatprep.subr.bf16.mxu0 0
  %92 = vmatpush1.bf16.msra.mxu0 %v73
  %93 = vmatprep.subr.bf16.mxu0 0
  %94 = vmatpush1.bf16.msra.mxu0 %v74
  %95 = vmatprep.subr.bf16.mxu0 0
  %96 = vmatpush1.bf16.msra.mxu0 %v75
  %97 = vmatprep.subr.bf16.mxu0 0
  %98 = vmatpush1.bf16.msra.mxu0 %v76
  %99 = vmatprep.subr.bf16.mxu0 0
  %100 = vmatpush1.bf16.msra.mxu0 %v77
  %101 = vmatprep.subr.bf16.mxu0 0
  %102 = vmatpush1.bf16.msra.mxu0 %v78
  %103 = vmatprep.subr.bf16.mxu0 0
  %104 = vmatpush1.bf16.msra.mxu0 0
  %105 = vmatprep.subr.bf16.mxu0 0
  %106 = vmatpush1.bf16.msra.mxu0 0
  %107 = vmatprep.subr.bf16.mxu0 0
  %108 = vmatpush1.bf16.msra.mxu0 0
  %109 = vmatprep.subr.bf16.mxu0 0
  %110 = vmatpush1.bf16.msra.mxu0 0
  %111 = vmatprep.subr.bf16.mxu0 0
  %112 = vmatpush1.bf16.msra.mxu0 0
  %113 = vmatprep.subr.bf16.mxu0 0
  %114 = vmatpush1.bf16.msra.mxu0 0
  %115 = vmatprep.subr.bf16.mxu0 0
  %116 = vmatpush1.bf16.msra.mxu0 0
  %117 = vmatprep.subr.bf16.mxu0 0
  %118 = vmatpush1.bf16.msra.mxu0 0
  %119 = vmatprep.mubr.bf16.mxu0 0
  %120 = vmatmul.mubr.bf16.gmra.mrb[0].mxu0 %v37
  %v121 = vpop.f32.mrb[0].mxu0
  %v122 = vadd.f32 0.0, %v121
  %v123 = vpop.f32.mrb[0].mxu0
  %v124 = vpop.f32.mrb[0].mxu0
  %v125 = vadd.f32 0.0, %v124
  %v126 = vpop.f32.mrb[0].mxu0
  %127 = vdwg.mxu0
  %v128 = vlaneseq
  %v129 = vand.u32 %v128, 127
  %s130 = smul.u32 0, 128
  %v131 = vstv %s130
  %v132 = vadd.s32 %v129, %v131
  %v133 = vld [vmem:[%s2] sm:$0xff]
  %v134 = vld [vmem:[%s2 + $0x8] sm:$0xff]
  %135 = vset.pattern.permute.xlu0 0
  %136 = vperm.xlu0 %135, %v133
  %v137 = vpop.permute.xlu0 %136
  %138 = vset.pattern.permute.xlu0 0
  %139 = vperm.xlu0 %138, %v134
  %v140 = vpop.permute.xlu0 %139
  %vm141 = vcmp.eq.s32.totalorder %v132, %v137
  %vm142 = vcmp.eq.s32.totalorder %v132, %v140
  %v143 = vsel %vm141, 1, 0
  %v144 = vsel %vm142, 1, 0
  %v145 = vcvt.s32.f32 %v143
  %v146 = vcvt.s32.f32 %v144
  %v147 = vmul.f32 %v122, 64.0
  %v148 = vmul.f32 %v125, 64.0
  %v149 = vmul.f32 %v145, 22.4
  %v150 = vmul.f32 %v146, 22.4
  %v151 = vsub.f32 %v147, %v149
  %v152 = vsub.f32 %v148, %v150
  %153 = vst [vmem:[%s3] sm:$0xff] %v151
  %154 = vst [vmem:[%s3 + $0x8] sm:$0xff] %v152
  // Predicated region
  $region14: #{model_forward.3} parent=0 // pred_check
    _
  $region15: #{model_forward.3} parent=0 // pred_check_branch
    %156 = sbr.rel (0) target = $region17
  $region16: #{model_forward.3} parent=0 // pred_region
    _
  $region17: #{model_forward.3} parent=0 // pred_fallthru
    _
  // Predicated region
  $region18: #{model_forward.3} parent=0 // pred_check
    _
  $region19: #{model_forward.3} parent=0 // pred_check_branch
    %158 = sbr.rel (0) target = $region21
  $region20: #{model_forward.3} parent=0 // pred_region
    _
  $region21: #{model_forward.3} parent=0 // pred_fallthru
    _

// kernel: model_forward.2
$region0: #{model_forward.2}
  #allocation0 [shape = 'u32[]', space=smem, size = 0x4, offset = 0x4, fixed_abs, tag = 'smem constant byte address 0x4 - core index']
  #allocation1 [shape = 'u32[144,128]{1,0:T(1,128)}', space=vmem, size = 0x12000, scoped, tag = 'internal scratch']
  %s0 = inlined_call_operand.vmem [shape: f32[16,1024], index: 0, kind: input, shape index: {}]
  %s1 = inlined_call_operand.vmem [shape: bf16[1024,128], index: 1, kind: input, shape index: {}]
  %s2 = inlined_call_operand.vmem [shape: f32[1,128], index: 2, kind: input, shape index: {}]
  %s3 = inlined_call_operand.vmem [shape: f32[16,128], index: 3, kind: output, shape index: {0}]
  %s4 = inlined_call_operand.vmem [shape: bf16[16,128], index: 4, kind: output, shape index: {1}]
  %5 = xla_tuple %s3, %s4
  %s6 = sld [smem:[#allocation0]]
  $region84: #{model_forward.2} parent=0
    _
  %s8 = ssub.s32 1, %s6
  %s9 = scalar_select 0, %s8, %s6
  $region1: #{model_forward.2} parent=0
    #allocation2 [shape = 'u8[65536]{0}', space=vmem, size = 0x10000, scoped, tag = 'input window, operand 0']
    loop: start=0, step=1, limit=4
    $region2: #{model_forward.2} parent=1 // loop_pre_header
      _
    $region3: #{model_forward.2} parent=1 // loop_header
      %s11 = sphi 0, %s15
      %p12 = scmp.ge.s32.totalorder %s11, 4
      %s18 = sphi 0, %s30
      %s19 = sphi 0, %s26
      %s20 = sphi 0, %s18
      %s21 = sphi 0, %s19
      %s22 = sphi 0, %s20
      %s23 = sphi 0, %s21
      %s35 = sphi 0, %s37
      %s38 = sphi 0, %s35
      %s39 = sphi 0, %s38
      %s55 = sphi 0, %s39
      %s61 = sphi 0, %s63
      %s64 = sphi 0, %s61
      %s65 = sphi 0, %s64
      %s81 = sphi 0, %s65
      %s85 = sphi 0, %s85
      %s87 = sphi 0, %s85
      %s88 = sphi 0, %s87
      %s102 = sphi 0, %s88
      %s108 = sphi 0, %s110
      %s111 = sphi 0, %s108
      %s112 = sphi 0, %s111
      %s128 = sphi 0, %s112
      %s134 = sphi 0, %s136
      %s137 = sphi 0, %s134
      %s138 = sphi 0, %s137
      %s154 = sphi 0, %s138
    $region4: #{model_forward.2} parent=1 // loop_header_branch
      %14 = sbr.rel (%p12) target = $region8
    $region5: #{model_forward.2} parent=1 // loop_body
      %s16 = ssub.s32 %s11, 1
      %s17 = ssub.s32 %s11, 2
      %s24 = sadd.s32 1, %s19
      %p25 = scmp.ge.s32.totalorder %s24, 2
      %s26 = scalar_select %p25, 0, %s24
      %s27 = sadd.s32 1, %s18
      %s28 = scalar_select %p25, %s27, %s18
      %p29 = scmp.ge.s32.totalorder %s28, 1
      %s30 = scalar_select %p29, 0, %s28
      %s31 = ssub.s32 %s18, %s30
      %s32 = ssub.s32 %s19, %s26
      %s33 = sor.u32 %s31, %s32
      %p34 = scmp.eq.s32.totalorder %s33, 0
      %s36 = sadd.s32 %s35, 1
      %s37 = scalar_select %p34, %s35, %s36
      %p40 = pneg %p34
      %p41 = scmp.eq.s32.totalorder %s11, 1
      %p42 = por %p40, %p41
      %p43 = scmp.ne.s32.totalorder %s35, %s38
      %p44 = scmp.eq.s32.totalorder %s11, 0
      %p45 = por %p43, %p44
      %p46 = scmp.ne.s32.totalorder %s35, %s38
      %p47 = scmp.eq.s32.totalorder %s16, 1
      %p48 = por %p46, %p47
      %p49 = scmp.ne.s32.totalorder %s38, %s39
      %p50 = scmp.eq.s32.totalorder %s16, 0
      %p51 = por %p49, %p50
      %p52 = scmp.ne.s32.totalorder %s38, %s39
      %p53 = scmp.eq.s32.totalorder %s17, 1
      %p54 = por %p52, %p53
      %p56 = scmp.ne.s32.totalorder %s39, %s55
      %p57 = scmp.eq.s32.totalorder %s17, 0
      %p58 = por %p56, %p57
      %s59 = ssub.s32 %s19, %s26
      %p60 = scmp.eq.s32.totalorder %s59, 0
      %s62 = sadd.s32 %s61, 1
      %s63 = scalar_select %p60, %s61, %s62
      %p66 = pneg %p60
      %p67 = scmp.eq.s32.totalorder %s11, 1
      %p68 = por %p66, %p67
      %p69 = scmp.ne.s32.totalorder %s61, %s64
      %p70 = scmp.eq.s32.totalorder %s11, 0
      %p71 = por %p69, %p70
      %p72 = scmp.ne.s32.totalorder %s61, %s64
      %p73 = scmp.eq.s32.totalorder %s16, 1
      %p74 = por %p72, %p73
      %p75 = scmp.ne.s32.totalorder %s64, %s65
      %p76 = scmp.eq.s32.totalorder %s16, 0
      %p77 = por %p75, %p76
      %p78 = scmp.ne.s32.totalorder %s64, %s65
      %p79 = scmp.eq.s32.totalorder %s17, 1
      %p80 = por %p78, %p79
      %p82 = scmp.ne.s32.totalorder %s65, %s81
      %p83 = scmp.eq.s32.totalorder %s17, 0
      %p84 = por %p82, %p83
      %s86 = sadd.s32 %s85, 1
      %p89 = scmp.eq.s32.totalorder %s11, 1
      %p90 = scmp.ne.s32.totalorder %s85, %s87
      %p91 = scmp.eq.s32.totalorder %s11, 0
      %p92 = por %p90, %p91
      %p93 = scmp.ne.s32.totalorder %s85, %s87
      %p94 = scmp.eq.s32.totalorder %s16, 1
      %p95 = por %p93, %p94
      %p96 = scmp.ne.s32.totalorder %s87, %s88
      %p97 = scmp.eq.s32.totalorder %s16, 0
      %p98 = por %p96, %p97
      %p99 = scmp.ne.s32.totalorder %s87, %s88
      %p100 = scmp.eq.s32.totalorder %s17, 1
      %p101 = por %p99, %p100
      %p103 = scmp.ne.s32.totalorder %s88, %s102
      %p104 = scmp.eq.s32.totalorder %s17, 0
      %p105 = por %p103, %p104
      %s106 = ssub.s32 %s18, %s30
      %p107 = scmp.eq.s32.totalorder %s106, 0
      %s109 = sadd.s32 %s108, 1
      %s110 = scalar_select %p107, %s108, %s109
      %p113 = pneg %p107
      %p114 = scmp.eq.s32.totalorder %s11, 1
      %p115 = por %p113, %p114
      %p116 = scmp.ne.s32.totalorder %s108, %s111
      %p117 = scmp.eq.s32.totalorder %s11, 0
      %p118 = por %p116, %p117
      %p119 = scmp.ne.s32.totalorder %s108, %s111
      %p120 = scmp.eq.s32.totalorder %s16, 1
      %p121 = por %p119, %p120
      %p122 = scmp.ne.s32.totalorder %s111, %s112
      %p123 = scmp.eq.s32.totalorder %s16, 0
      %p124 = por %p122, %p123
      %p125 = scmp.ne.s32.totalorder %s111, %s112
      %p126 = scmp.eq.s32.totalorder %s17, 1
      %p127 = por %p125, %p126
      %p129 = scmp.ne.s32.totalorder %s112, %s128
      %p130 = scmp.eq.s32.totalorder %s17, 0
      %p131 = por %p129, %p130
      %s132 = ssub.s32 %s18, %s30
      %p133 = scmp.eq.s32.totalorder %s132, 0
      %s135 = sadd.s32 %s134, 1
      %s136 = scalar_select %p133, %s134, %s135
      %p139 = pneg %p133
      %p140 = scmp.eq.s32.totalorder %s11, 1
      %p141 = por %p139, %p140
      %p142 = scmp.ne.s32.totalorder %s134, %s137
      %p143 = scmp.eq.s32.totalorder %s11, 0
      %p144 = por %p142, %p143
      %p145 = scmp.ne.s32.totalorder %s134, %s137
      %p146 = scmp.eq.s32.totalorder %s16, 1
      %p147 = por %p145, %p146
      %p148 = scmp.ne.s32.totalorder %s137, %s138
      %p149 = scmp.eq.s32.totalorder %s16, 0
      %p150 = por %p148, %p149
      %p151 = scmp.ne.s32.totalorder %s137, %s138
      %p152 = scmp.eq.s32.totalorder %s17, 1
      %p153 = por %p151, %p152
      %p155 = scmp.ne.s32.totalorder %s138, %s154
      %p156 = scmp.eq.s32.totalorder %s17, 0
      %p157 = por %p155, %p156
      %p158 = scmp.le.s32.totalorder 1, %s11
      %p159 = scmp.lt.s32.totalorder %s11, 3
      %p160 = pnand %p158, %p159
      %p161 = pneg %p160
      // Predicated region
      $region9: #{model_forward.2} parent=5 // pred_check
        _
      $region10: #{model_forward.2} parent=5 // pred_check_branch
        %163 = sbr.rel (%p160) target = $region12
      $region11: #{model_forward.2} parent=5 // pred_region
        %s164 = ssub.s32 %s11, 1
        // Predicated region
        $region13: #{model_forward.2} parent=11 // pred_check
          %p165 = pneg %p98
        $region14: #{model_forward.2} parent=11 // pred_check_branch
          %167 = sbr.rel (%p165) target = $region16
        $region15: #{model_forward.2} parent=11 // pred_region
          _
        $region16: #{model_forward.2} parent=11 // pred_fallthru
          _
      $region12: #{model_forward.2} parent=5 // pred_fallthru
        _
      %p168 = scmp.lt.s32.totalorder %s11, 2
      // Predicated region
      $region17: #{model_forward.2} parent=5 // pred_check
        %p169 = pneg %p168
      $region18: #{model_forward.2} parent=5 // pred_check_branch
        %171 = sbr.rel (%p169) target = $region20
      $region19: #{model_forward.2} parent=5 // pred_region
        // Predicated region
        $region21: #{model_forward.2} parent=19 // pred_check
          %p172 = pneg %p45
        $region22: #{model_forward.2} parent=19 // pred_check_branch
          %174 = sbr.rel (%p172) target = $region24
        $region23: #{model_forward.2} parent=19 // pred_region
          %s175 = sand.u32 %s35, 1
          %s176 = sand.u32 %s35, 1
          %s177 = smul.addr %s176, 64
          %s178 = scalar_lea.vmem [#allocation2], %s177
          %s179 = smul.u32 2, %s18
          %s180 = smul.u32 4, %s19
          %s181 = smul.addr %s179, 8
          %s182 = sadd.s32 %s180, %s181
          %s183 = smul.addr %s182, 8
          %s184 = scalar_lea.vmem %s0, %s183
          // Predicated region
          $region25: #{model_forward.2} parent=23 // pred_check
            _
          $region26: #{model_forward.2} parent=23 // pred_check_branch
            %186 = sbr.rel (0) target = $region28
          $region27: #{model_forward.2} parent=23 // pred_region
            // Predicated region
            $region29: #{model_forward.2} parent=27 // pred_check
              _
            $region30: #{model_forward.2} parent=27 // pred_check_branch
              %188 = sbr.rel (0) target = $region32
            $region31: #{model_forward.2} parent=27 // pred_region
              loop: start=0, step=1, limit=1
              $region33: #{model_forward.2} parent=31 // loop_pre_header
                _
              $region34: #{model_forward.2} parent=31 // loop_header
                %s190 = sphi 0, %s194
                %p191 = scmp.ge.s32.totalorder %s190, 1
                %s195 = sphi %s184, %s184
                %s196 = sphi %s178, %s178
              $region35: #{model_forward.2} parent=31 // loop_header_branch
                %193 = sbr.rel (%p191) target = $region39
              $region36: #{model_forward.2} parent=31 // loop_body
                %v197 = vld [vmem:[%s195] sm:$0xff]
                %198 = vst [vmem:[%s196] sm:$0xff] %v197
                %v199 = vld [vmem:[%s195 + $0x8] sm:$0xff]
                %200 = vst [vmem:[%s196 + $0x8] sm:$0xff] %v199
                %v201 = vld [vmem:[%s195 + $0x10] sm:$0xff]
                %202 = vst [vmem:[%s196 + $0x10] sm:$0xff] %v201
                %v203 = vld [vmem:[%s195 + $0x18] sm:$0xff]
                %204 = vst [vmem:[%s196 + $0x18] sm:$0xff] %v203
                %v205 = vld [vmem:[%s195 + $0x40] sm:$0xff]
                %206 = vst [vmem:[%s196 + $0x20] sm:$0xff] %v205
                %v207 = vld [vmem:[%s195 + $0x48] sm:$0xff]
                %208 = vst [vmem:[%s196 + $0x28] sm:$0xff] %v207
                %v209 = vld [vmem:[%s195 + $0x50] sm:$0xff]
                %210 = vst [vmem:[%s196 + $0x30] sm:$0xff] %v209
                %v211 = vld [vmem:[%s195 + $0x58] sm:$0xff]
                %212 = vst [vmem:[%s196 + $0x38] sm:$0xff] %v211
              $region37: #{model_forward.2} parent=31 // loop_footer
                %s194 = sadd.s32 1, %s190
              $region38: #{model_forward.2} parent=31 // loop_footer_branch
                %189 = sbr.rel target = $region34
              $region39: #{model_forward.2} parent=31 // loop_exit
                _
            $region32: #{model_forward.2} parent=27 // pred_fallthru
              _
            // Predicated region
            $region40: #{model_forward.2} parent=27 // pred_check
              _
            $region41: #{model_forward.2} parent=27 // pred_check_branch
              %214 = sbr.rel target = $region43
            $region42: #{model_forward.2} parent=27 // pred_region
              _
            $region43: #{model_forward.2} parent=27 // pred_fallthru
              _
          $region28: #{model_forward.2} parent=23 // pred_fallthru
            _
          %215 = vnop
        $region24: #{model_forward.2} parent=19 // pred_fallthru
          _
        // Predicated region
        $region44: #{model_forward.2} parent=19 // pred_check
          %p216 = pneg %p71
        $region45: #{model_forward.2} parent=19 // pred_check_branch
          %218 = sbr.rel (%p216) target = $region47
        $region46: #{model_forward.2} parent=19 // pred_region
          %s219 = smul.u32 64, %s19
          %p220 = scmp.lt.s32.totalorder %s219, 127
          %s221 = scalar_select %p220, %s219, 127
          %s222 = smul.addr %s221, 4
          %s223 = scalar_lea.vmem %s1, %s222
          %s224 = smul.u32 64, %s19
        $region47: #{model_forward.2} parent=19 // pred_fallthru
          _
      $region20: #{model_forward.2} parent=5 // pred_fallthru
        _
      %p225 = scmp.le.s32.totalorder 1, %s11
      %p226 = scmp.lt.s32.totalorder %s11, 3
      %p227 = pnand %p225, %p226
      %p228 = pneg %p227
      // Predicated region
      $region48: #{model_forward.2} parent=5 // pred_check
        _
      $region49: #{model_forward.2} parent=5 // pred_check_branch
        %230 = sbr.rel (%p227) target = $region51
      $region50: #{model_forward.2} parent=5 // pred_region
        %s231 = ssub.s32 %s11, 1
        %s232 = sand.u32 %s38, 1
        %s233 = sand.u32 %s38, 1
        %s234 = smul.addr %s233, 64
        %s235 = scalar_lea.vmem [#allocation2], %s234
        // Predicated region
        $region52: #{model_forward.2} parent=50 // pred_check
          %p236 = pneg %p51
        $region53: #{model_forward.2} parent=50 // pred_check_branch
          %238 = sbr.rel (%p236) target = $region55
        $region54: #{model_forward.2} parent=50 // pred_region
          _
        $region55: #{model_forward.2} parent=50 // pred_fallthru
          _
        %s239 = sand.u32 %s38, 1
        %s240 = sand.u32 %s38, 1
        %s241 = smul.addr %s240, 64
        %s242 = scalar_lea.vmem [#allocation2], %s241
        %p243 = pneg %p51
        %p244 = pneg %p48
        %s245 = smul.u32 64, %s21
        %p246 = scmp.lt.s32.totalorder %s245, 127
        %s247 = scalar_select %p246, %s245, 127
        %s248 = smul.addr %s247, 4
        %s249 = scalar_lea.vmem %s1, %s248
        %p250 = pneg %p77
        %p251 = pneg %p74
        %p252 = pneg %p98
        %p253 = pneg %p95
        %p254 = pneg %p124
        %p255 = pneg %p121
        %s256 = smul.u32 2, %s20
        %p257 = scmp.lt.s32.totalorder %s256, 1
        %s258 = scalar_select %p257, %s256, 1
        %s259 = smul.addr %s258, 8
        %s260 = scalar_lea.vmem %s3, %s259
        %p261 = pneg %p150
        %p262 = pneg %p147
        %s263 = smul.u32 2, %s20
        %p264 = scmp.lt.s32.totalorder %s263, 1
        %s265 = scalar_select %p264, %s263, 1
        %s266 = smul.addr %s265, 4
        %s267 = scalar_lea.vmem %s4, %s266
        %s268 = smul.u32 2, %s20
        %s269 = smul.u32 4, %s21
        %s270 = smul.u32 64, %s21
        %p271 = scmp.lt.s32.totalorder %s270, 127
        %s272 = scalar_select %p271, %s270, 127
        %s273 = smul.addr %s272, 4
        %s274 = scalar_lea.vmem %s1, %s273
        %s275 = smul.u32 64, %s21
        %s276 = smul.u32 2, %s20
        %p277 = scmp.lt.s32.totalorder %s276, 1
        %s278 = scalar_select %p277, %s276, 1
        %s279 = smul.addr %s278, 8
        %s280 = scalar_lea.vmem %s3, %s279
        %s281 = smul.u32 2, %s20
        %s282 = smul.u32 2, %s20
        %p283 = scmp.lt.s32.totalorder %s282, 1
        %s284 = scalar_select %p283, %s282, 1
        %s285 = smul.addr %s284, 4
        %s286 = scalar_lea.vmem %s4, %s285
        %s287 = smul.u32 2, %s20
        %p289 = scmp.eq.s32.totalorder %s21, 0
        // Predicated region
        $region56: #{model_forward.2} parent=50 // pred_check
          %p290 = pneg %p289
        $region57: #{model_forward.2} parent=50 // pred_check_branch
          %292 = sbr.rel (%p290) target = $region59
        $region58: #{model_forward.2} parent=50 // pred_region
          %293 = vst [vmem:[%s280] sm:$0xff] 0.0
          %294 = vst [vmem:[%s280 + $0x8] sm:$0xff] 0.0
        $region59: #{model_forward.2} parent=50 // pred_fallthru
          _
        %v295 = vld [vmem:[%s280] sm:$0xff]
        %v296 = vld [vmem:[%s280 + $0x8] sm:$0xff]
        %v297 = vld [vmem:[%s235] sm:$0xff]
        %v298 = vld [vmem:[%s235 + $0x8] sm:$0xff]
        %v299 = vld [vmem:[%s235 + $0x10] sm:$0xff]
        %v300 = vld [vmem:[%s235 + $0x18] sm:$0xff]
        %v301 = vld [vmem:[%s235 + $0x20] sm:$0xff]
        %v302 = vld [vmem:[%s235 + $0x28] sm:$0xff]
        %v303 = vld [vmem:[%s235 + $0x30] sm:$0xff]
        %v304 = vld [vmem:[%s235 + $0x38] sm:$0xff]
        %v305 = vpack.c.bf16 %v301, %v297
        %v306 = vpack.c.bf16 %v302, %v298
        %v307 = vpack.c.bf16 %v303, %v299
        %v308 = vpack.c.bf16 %v304, %v300
        %v309 = vld [vmem:[%s274] sm:$0xf]
        %v310 = vld [vmem:[%s274 + $0x4] sm:$0xf]
        %v311 = vld [vmem:[%s274 + $0x8] sm:$0xf]
        %v312 = vld [vmem:[%s274 + $0xc] sm:$0xf]
        %v313 = vld [vmem:[%s274 + $0x10] sm:$0xf]
        %v314 = vld [vmem:[%s274 + $0x14] sm:$0xf]
        %v315 = vld [vmem:[%s274 + $0x18] sm:$0xf]
        %v316 = vld [vmem:[%s274 + $0x1c] sm:$0xf]
        %v317 = vld [vmem:[%s274 + $0x20] sm:$0xf]
        %v318 = vld [vmem:[%s274 + $0x24] sm:$0xf]
        %v319 = vld [vmem:[%s274 + $0x28] sm:$0xf]
        %v320 = vld [vmem:[%s274 + $0x2c] sm:$0xf]
        %v321 = vld [vmem:[%s274 + $0x30] sm:$0xf]
        %v322 = vld [vmem:[%s274 + $0x34] sm:$0xf]
        %v323 = vld [vmem:[%s274 + $0x38] sm:$0xf]
        %v324 = vld [vmem:[%s274 + $0x3c] sm:$0xf]
        %v325 = vld [vmem:[%s274 + $0x40] sm:$0xf]
        %v326 = vld [vmem:[%s274 + $0x44] sm:$0xf]
        %v327 = vld [vmem:[%s274 + $0x48] sm:$0xf]
        %v328 = vld [vmem:[%s274 + $0x4c] sm:$0xf]
        %v329 = vld [vmem:[%s274 + $0x50] sm:$0xf]
        %v330 = vld [vmem:[%s274 + $0x54] sm:$0xf]
        %v331 = vld [vmem:[%s274 + $0x58] sm:$0xf]
        %v332 = vld [vmem:[%s274 + $0x5c] sm:$0xf]
        %v333 = vld [vmem:[%s274 + $0x60] sm:$0xf]
        %v334 = vld [vmem:[%s274 + $0x64] sm:$0xf]
        %v335 = vld [vmem:[%s274 + $0x68] sm:$0xf]
        %v336 = vld [vmem:[%s274 + $0x6c] sm:$0xf]
        %v337 = vld [vmem:[%s274 + $0x70] sm:$0xf]
        %v338 = vld [vmem:[%s274 + $0x74] sm:$0xf]
        %v339 = vld [vmem:[%s274 + $0x78] sm:$0xf]
        %v340 = vld [vmem:[%s274 + $0x7c] sm:$0xf]
        %v341 = vld [vmem:[%s274 + $0x80] sm:$0xf]
        %v342 = vld [vmem:[%s274 + $0x84] sm:$0xf]
        %v343 = vld [vmem:[%s274 + $0x88] sm:$0xf]
        %v344 = vld [vmem:[%s274 + $0x8c] sm:$0xf]
        %v345 = vld [vmem:[%s274 + $0x90] sm:$0xf]
        %v346 = vld [vmem:[%s274 + $0x94] sm:$0xf]
        %v347 = vld [vmem:[%s274 + $0x98] sm:$0xf]
        %v348 = vld [vmem:[%s274 + $0x9c] sm:$0xf]
        %v349 = vld [vmem:[%s274 + $0xa0] sm:$0xf]
        %v350 = vld [vmem:[%s274 + $0xa4] sm:$0xf]
        %v351 = vld [vmem:[%s274 + $0xa8] sm:$0xf]
        %v352 = vld [vmem:[%s274 + $0xac] sm:$0xf]
        %v353 = vld [vmem:[%s274 + $0xb0] sm:$0xf]
        %v354 = vld [vmem:[%s274 + $0xb4] sm:$0xf]
        %v355 = vld [vmem:[%s274 + $0xb8] sm:$0xf]
        %v356 = vld [vmem:[%s274 + $0xbc] sm:$0xf]
        %v357 = vld [vmem:[%s274 + $0xc0] sm:$0xf]
        %v358 = vld [vmem:[%s274 + $0xc4] sm:$0xf]
        %v359 = vld [vmem:[%s274 + $0xc8] sm:$0xf]
        %v360 = vld [vmem:[%s274 + $0xcc] sm:$0xf]
        %v361 = vld [vmem:[%s274 + $0xd0] sm:$0xf]
        %v362 = vld [vmem:[%s274 + $0xd4] sm:$0xf]
        %v363 = vld [vmem:[%s274 + $0xd8] sm:$0xf]
        %v364 = vld [vmem:[%s274 + $0xdc] sm:$0xf]
        %v365 = vld [vmem:[%s274 + $0xe0] sm:$0xf]
        %v366 = vld [vmem:[%s274 + $0xe4] sm:$0xf]
        %v367 = vld [vmem:[%s274 + $0xe8] sm:$0xf]
        %v368 = vld [vmem:[%s274 + $0xec] sm:$0xf]
        %v369 = vld [vmem:[%s274 + $0xf0] sm:$0xf]
        %v370 = vld [vmem:[%s274 + $0xf4] sm:$0xf]
        %v371 = vld [vmem:[%s274 + $0xf8] sm:$0xf]
        %v372 = vld [vmem:[%s274 + $0xfc] sm:$0xf]
        %v437 = vunpack.c.l.b16 %v309
        %v438 = vunpack.c.l.b16 %v310
        %v439 = vunpack.c.l.b16 %v311
        %v440 = vunpack.c.l.b16 %v312
        %v441 = vunpack.c.l.b16 %v313
        %v442 = vunpack.c.l.b16 %v314
        %v443 = vunpack.c.l.b16 %v315
        %v444 = vunpack.c.l.b16 %v316
        %v445 = vunpack.c.l.b16 %v317
        %v446 = vunpack.c.l.b16 %v318
        %v447 = vunpack.c.l.b16 %v319
        %v448 = vunpack.c.l.b16 %v320
        %v449 = vunpack.c.l.b16 %v321
        %v450 = vunpack.c.l.b16 %v322
        %v451 = vunpack.c.l.b16 %v323
        %v452 = vunpack.c.l.b16 %v324
        %v453 = vunpack.c.l.b16 %v325
        %v454 = vunpack.c.l.b16 %v326
        %v455 = vunpack.c.l.b16 %v327
        %v456 = vunpack.c.l.b16 %v328
        %v457 = vunpack.c.l.b16 %v329
        %v458 = vunpack.c.l.b16 %v330
        %v459 = vunpack.c.l.b16 %v331
        %v460 = vunpack.c.l.b16 %v332
        %v461 = vunpack.c.l.b16 %v333
        %v462 = vunpack.c.l.b16 %v334
        %v463 = vunpack.c.l.b16 %v335
        %v464 = vunpack.c.l.b16 %v336
        %v465 = vunpack.c.l.b16 %v337
        %v466 = vunpack.c.l.b16 %v338
        %v467 = vunpack.c.l.b16 %v339
        %v468 = vunpack.c.l.b16 %v340
        %v469 = vunpack.c.l.b16 %v341
        %v470 = vunpack.c.l.b16 %v342
        %v471 = vunpack.c.l.b16 %v343
        %v472 = vunpack.c.l.b16 %v344
        %v473 = vunpack.c.l.b16 %v345
        %v474 = vunpack.c.l.b16 %v346
        %v475 = vunpack.c.l.b16 %v347
        %v476 = vunpack.c.l.b16 %v348
        %v477 = vunpack.c.l.b16 %v349
        %v478 = vunpack.c.l.b16 %v350
        %v479 = vunpack.c.l.b16 %v351
        %v480 = vunpack.c.l.b16 %v352
        %v481 = vunpack.c.l.b16 %v353
        %v482 = vunpack.c.l.b16 %v354
        %v483 = vunpack.c.l.b16 %v355
        %v484 = vunpack.c.l.b16 %v356
        %v485 = vunpack.c.l.b16 %v357
        %v486 = vunpack.c.l.b16 %v358
        %v487 = vunpack.c.l.b16 %v359
        %v488 = vunpack.c.l.b16 %v360
        %v489 = vunpack.c.l.b16 %v361
        %v490 = vunpack.c.l.b16 %v362
        %v491 = vunpack.c.l.b16 %v363
        %v492 = vunpack.c.l.b16 %v364
        %v493 = vunpack.c.l.b16 %v365
        %v494 = vunpack.c.l.b16 %v366
        %v495 = vunpack.c.l.b16 %v367
        %v496 = vunpack.c.l.b16 %v368
        %v497 = vunpack.c.l.b16 %v369
        %v498 = vunpack.c.l.b16 %v370
        %v499 = vunpack.c.l.b16 %v371
        %v500 = vunpack.c.l.b16 %v372
        %v501 = vpack.c.b16 %v438, %v437
        %v502 = vpack.c.b16 %v440, %v439
        %v503 = vpack.c.b16 %v442, %v441
        %v504 = vpack.c.b16 %v444, %v443
        %v505 = vpack.c.b16 %v446, %v445
        %v506 = vpack.c.b16 %v448, %v447
        %v507 = vpack.c.b16 %v450, %v449
        %v508 = vpack.c.b16 %v452, %v451
        %v509 = vpack.c.b16 %v454, %v453
        %v510 = vpack.c.b16 %v456, %v455
        %v511 = vpack.c.b16 %v458, %v457
        %v512 = vpack.c.b16 %v460, %v459
        %v513 = vpack.c.b16 %v462, %v461
        %v514 = vpack.c.b16 %v464, %v463
        %v515 = vpack.c.b16 %v466, %v465
        %v516 = vpack.c.b16 %v468, %v467
        %v517 = vpack.c.b16 %v470, %v469
        %v518 = vpack.c.b16 %v472, %v471
        %v519 = vpack.c.b16 %v474, %v473
        %v520 = vpack.c.b16 %v476, %v475
        %v521 = vpack.c.b16 %v478, %v477
        %v522 = vpack.c.b16 %v480, %v479
        %v523 = vpack.c.b16 %v482, %v481
        %v524 = vpack.c.b16 %v484, %v483
        %v525 = vpack.c.b16 %v486, %v485
        %v526 = vpack.c.b16 %v488, %v487
        %v527 = vpack.c.b16 %v490, %v489
        %v528 = vpack.c.b16 %v492, %v491
        %v529 = vpack.c.b16 %v494, %v493
        %v530 = vpack.c.b16 %v496, %v495
        %v531 = vpack.c.b16 %v498, %v497
        %v532 = vpack.c.b16 %v500, %v499
        %565 = vmatprep.subr.bf16.mxu0 0
        %566 = vmatpush1.bf16.msra.mxu0 %v501
        %567 = vmatprep.subr.bf16.mxu0 0
        %568 = vmatpush1.bf16.msra.mxu0 %v502
        %569 = vmatprep.subr.bf16.mxu0 0
        %570 = vmatpush1.bf16.msra.mxu0 %v503
        %571 = vmatprep.subr.bf16.mxu0 0
        %572 = vmatpush1.bf16.msra.mxu0 %v504
        %573 = vmatprep.subr.bf16.mxu0 0
        %574 = vmatpush1.bf16.msra.mxu0 %v505
        %575 = vmatprep.subr.bf16.mxu0 0
        %576 = vmatpush1.bf16.msra.mxu0 %v506
        %577 = vmatprep.subr.bf16.mxu0 0
        %578 = vmatpush1.bf16.msra.mxu0 %v507
        %579 = vmatprep.subr.bf16.mxu0 0
        %580 = vmatpush1.bf16.msra.mxu0 %v508
        %581 = vmatprep.subr.bf16.mxu0 0
        %582 = vmatpush1.bf16.msra.mxu0 %v509
        %583 = vmatprep.subr.bf16.mxu0 0
        %584 = vmatpush1.bf16.msra.mxu0 %v510
        %585 = vmatprep.subr.bf16.mxu0 0
        %586 = vmatpush1.bf16.msra.mxu0 %v511
        %587 = vmatprep.subr.bf16.mxu0 0
        %588 = vmatpush1.bf16.msra.mxu0 %v512
        %589 = vmatprep.subr.bf16.mxu0 0
        %590 = vmatpush1.bf16.msra.mxu0 %v513
        %591 = vmatprep.subr.bf16.mxu0 0
        %592 = vmatpush1.bf16.msra.mxu0 %v514
        %593 = vmatprep.subr.bf16.mxu0 0
        %594 = vmatpush1.bf16.msra.mxu0 %v515
        %595 = vmatprep.subr.bf16.mxu0 0
        %596 = vmatpush1.bf16.msra.mxu0 %v516
        %597 = vmatprep.mubr.bf16.mxu0 %v306
        %598 = vmatmul.mubr.bf16.gmra.mrb[0].mxu0 %v305
        %v599 = vpop.f32.mrb[0].mxu0
        %v600 = vadd.f32 0.0, %v599
        %v601 = vpop.f32.mrb[0].mxu0
        %v602 = vpop.f32.mrb[0].mxu0
        %v603 = vadd.f32 0.0, %v602
        %v604 = vpop.f32.mrb[0].mxu0
        %605 = vdwg.mxu0
        %606 = vmatprep.subr.bf16.mxu0 0
        %607 = vmatpush1.bf16.msra.mxu0 %v517
        %608 = vmatprep.subr.bf16.mxu0 0
        %609 = vmatpush1.bf16.msra.mxu0 %v518
        %610 = vmatprep.subr.bf16.mxu0 0
        %611 = vmatpush1.bf16.msra.mxu0 %v519
        %612 = vmatprep.subr.bf16.mxu0 0
        %613 = vmatpush1.bf16.msra.mxu0 %v520
        %614 = vmatprep.subr.bf16.mxu0 0
        %615 = vmatpush1.bf16.msra.mxu0 %v521
        %616 = vmatprep.subr.bf16.mxu0 0
        %617 = vmatpush1.bf16.msra.mxu0 %v522
        %618 = vmatprep.subr.bf16.mxu0 0
        %619 = vmatpush1.bf16.msra.mxu0 %v523
        %620 = vmatprep.subr.bf16.mxu0 0
        %621 = vmatpush1.bf16.msra.mxu0 %v524
        %622 = vmatprep.subr.bf16.mxu0 0
        %623 = vmatpush1.bf16.msra.mxu0 %v525
        %624 = vmatprep.subr.bf16.mxu0 0
        %625 = vmatpush1.bf16.msra.mxu0 %v526
        %626 = vmatprep.subr.bf16.mxu0 0
        %627 = vmatpush1.bf16.msra.mxu0 %v527
        %628 = vmatprep.subr.bf16.mxu0 0
        %629 = vmatpush1.bf16.msra.mxu0 %v528
        %630 = vmatprep.subr.bf16.mxu0 0
        %631 = vmatpush1.bf16.msra.mxu0 %v529
        %632 = vmatprep.subr.bf16.mxu0 0
        %633 = vmatpush1.bf16.msra.mxu0 %v530
        %634 = vmatprep.subr.bf16.mxu0 0
        %635 = vmatpush1.bf16.msra.mxu0 %v531
        %636 = vmatprep.subr.bf16.mxu0 0
        %637 = vmatpush1.bf16.msra.mxu0 %v532
        %638 = vmatprep.mubr.bf16.mxu0 %v308
        %639 = vmatmul.mubr.bf16.gmra.mrb[0].mxu0 %v307
        %v640 = vpop.f32.mrb[0].mxu0
        %v641 = vadd.f32 %v600, %v640
        %v642 = vpop.f32.mrb[0].mxu0
        %v643 = vpop.f32.mrb[0].mxu0
        %v644 = vadd.f32 %v603, %v643
        %v645 = vpop.f32.mrb[0].mxu0
        %646 = vdwg.mxu0
        %v647 = vadd.f32 %v295, %v641
        %v648 = vadd.f32 %v296, %v644
        %649 = vst [vmem:[%s280] sm:$0xff] %v647
        %650 = vst [vmem:[%s280 + $0x8] sm:$0xff] %v648
        %p651 = scmp.eq.s32.totalorder %s21, 1
        // Predicated region
        $region60: #{model_forward.2} parent=50 // pred_check
          %p652 = pneg %p651
        $region61: #{model_forward.2} parent=50 // pred_check_branch
          %654 = sbr.rel (%p652) target = $region63
        $region62: #{model_forward.2} parent=50 // pred_region
          %v655 = vld [vmem:[%s280] sm:$0xff]
          %v656 = vld [vmem:[%s280 + $0x8] sm:$0xff]
          %v657 = vld [vmem:[%s2] sm:$0x1]
          %v659 = vlaneseq
          %v660 = vshrl.u32 %v659, 7
          %v661 = vsub.s32 0, %v660
          %v662 = vrot.slane %v657, %v661
          %v664 = vadd.f32 %v655, %v662
          %v665 = vadd.f32 %v656, %v662
          %666 = vst [vmem:[%s280] sm:$0xff] %v664
          %667 = vst [vmem:[%s280 + $0x8] sm:$0xff] %v665
          %v668 = vmul.f32 %v664, %v664
          %v669 = vmul.f32 %v665, %v665
          %670 = vadd.xlane.f32.xlu0 %v668
          %v671 = vpop.xlane.xlu0 %670
          %672 = vadd.xlane.f32.xlu0 %v669
          %v673 = vpop.xlane.xlu0 %672
          %v674 = vmax.f32 %v671, 1e-24
          %v675 = vmax.f32 %v673, 1e-24
          %v676 = vrsqrt.pop %v674
          %v677 = vrsqrt.pop %v675
          %v678 = vmul.f32 %v664, %v676
          %v679 = vmul.f32 %v665, %v677
          %v680 = vpack.c.bf16 %v679, %v678
          %v682 = vunpack.c.l.b16 %v680
          %v683 = vunpack.c.h.b16 %v680
          %v684 = vpack.c.b16 %v682, %v682
          %v685 = vpack.c.b16 %v683, %v683
          %688 = vst [vmem:[%s286] sm:$0xf] %v684
          %689 = vst [vmem:[%s286 + $0x4] sm:$0xf] %v685
        $region63: #{model_forward.2} parent=50 // pred_fallthru
          _
        %s690 = smul.u32 2, %s20
        %p691 = scmp.lt.s32.totalorder %s690, 1
        %s692 = scalar_select %p691, %s690, 1
        %s693 = smul.addr %s692, 8
        %s694 = scalar_lea.vmem %s3, %s693
        %s695 = smul.u32 2, %s20
        %p696 = scmp.lt.s32.totalorder %s695, 1
        %s697 = scalar_select %p696, %s695, 1
        %s698 = smul.addr %s697, 4
        %s699 = scalar_lea.vmem %s4, %s698
        // Predicated region
        $region64: #{model_forward.2} parent=50 // pred_check
          %p700 = pneg %p121
        $region65: #{model_forward.2} parent=50 // pred_check_branch
          %702 = sbr.rel (%p700) target = $region67
        $region66: #{model_forward.2} parent=50 // pred_region
          %s703 = smul.u32 2, %s20
        $region67: #{model_forward.2} parent=50 // pred_fallthru
          _
        // Predicated region
        $region68: #{model_forward.2} parent=50 // pred_check
          %p704 = pneg %p147
        $region69: #{model_forward.2} parent=50 // pred_check_branch
          %706 = sbr.rel (%p704) target = $region71
        $region70: #{model_forward.2} parent=50 // pred_region
          %s707 = smul.u32 2, %s20
        $region71: #{model_forward.2} parent=50 // pred_fallthru
          _
        // Predicated region
        $region72: #{model_forward.2} parent=50 // pred_check
          %p708 = pneg %p121
        $region73: #{model_forward.2} parent=50 // pred_check_branch
          %710 = sbr.rel (%p708) target = $region75
        $region74: #{model_forward.2} parent=50 // pred_region
          %s711 = smul.u32 2, %s20
          %p712 = scmp.lt.s32.totalorder %s711, 1
          %s713 = scalar_select %p712, %s711, 1
          %s714 = smul.addr %s713, 8
          %s715 = scalar_lea.vmem %s3, %s714
        $region75: #{model_forward.2} parent=50 // pred_fallthru
          _
        // Predicated region
        $region76: #{model_forward.2} parent=50 // pred_check
          %p716 = pneg %p147
        $region77: #{model_forward.2} parent=50 // pred_check_branch
          %718 = sbr.rel (%p716) target = $region79
        $region78: #{model_forward.2} parent=50 // pred_region
          %s719 = smul.u32 2, %s20
          %p720 = scmp.lt.s32.totalorder %s719, 1
          %s721 = scalar_select %p720, %s719, 1
          %s722 = smul.addr %s721, 4
          %s723 = scalar_lea.vmem %s4, %s722
        $region79: #{model_forward.2} parent=50 // pred_fallthru
          _
      $region51: #{model_forward.2} parent=5 // pred_fallthru
        _
      %p724 = scmp.le.s32.totalorder 2, %s11
      // Predicated region
      $region80: #{model_forward.2} parent=5 // pred_check
        %p725 = pneg %p724
      $region81: #{model_forward.2} parent=5 // pred_check_branch
        %727 = sbr.rel (%p725) target = $region83
      $region82: #{model_forward.2} parent=5 // pred_region
        %s728 = ssub.s32 %s11, 2
      $region83: #{model_forward.2} parent=5 // pred_fallthru
        _
    $region6: #{model_forward.2} parent=1 // loop_footer
      %s15 = sadd.s32 1, %s11
    $region7: #{model_forward.2} parent=1 // loop_footer_branch
      %10 = sbr.rel target = $region3
    $region8: #{model_forward.2} parent=1 // loop_exit
      _

</llo_original>
